<compile_context>
chip_gen: v7x
topology: tpu7x:2x2x1
jax: 0.10.0
libtpu: 0.0.40
codegen_flags: <defaults>
</compile_context>

<pallas_src>
import functools

import jax
import jax.numpy as jnp
from jax.experimental import pallas as pl
from jax.experimental.pallas import tpu as pltpu


# ------------------------------ Pallas kernel ------------------------------ #

def _bottleneck_kernel(x_ref, w1_ref, w2_ref, w3_ref,
                       s1_ref, b1_ref, s2_ref, b2_ref, s3_ref, b3_ref,
                       o_ref, *, K1, K2, K3):
    """Fused conv1+bn1+relu -> conv2+bn2+relu -> conv3+bn3 -> +identity -> relu.

    x_ref : (1, C, L)            one batch element, NCL layout (L on lanes)
    wX_ref: (CoutX, KX * CinX)   conv weights, flattened tap-major per out-chan
    sX/bX : (CoutX, 1)           folded-BN scale / shift per output channel
    o_ref : (1, C, L)
    """
    x_cl = x_ref[0].astype(jnp.float32)                   # (C, L)
    L = x_cl.shape[1]

    def conv_bn(h, w_ref, s_ref, b_ref, K, relu):
        # h: (Cin, L). 'same' padding, stride 1, single MXU matmul via im2col.
        cin = h.shape[0]
        pad = (K - 1) // 2
        z = jnp.zeros((cin, pad), jnp.float32)
        hp = jnp.concatenate([z, h, z], axis=1)            # (Cin, L + K - 1)
        # im2col slab: piece k sits at sublane offset k*Cin (8-aligned).
        cols = jnp.concatenate([hp[:, k:k + L] for k in range(K)], axis=0)
        out = jnp.dot(w_ref[...], cols,
                      preferred_element_type=jnp.float32)  # (Cout, L)
        out = out * s_ref[...] + b_ref[...]                # folded BatchNorm
        if relu:
            out = jnp.maximum(out, 0.0)
        return out

    h = conv_bn(x_cl, w1_ref, s1_ref, b1_ref, K1, relu=True)
    h = conv_bn(h,    w2_ref, s2_ref, b2_ref, K2, relu=True)
    h = conv_bn(h,    w3_ref, s3_ref, b3_ref, K3, relu=False)
    out = jnp.maximum(h + x_cl, 0.0)                       # residual + ReLU
    o_ref[0] = out.astype(o_ref.dtype)                     # (C, L): L on lanes


# ------------------------------- Wrapper ------------------------------------ #

def bottleneck_forward(x_ncl, params):
    """Forward pass of Bottleneck (stride=1, downsample=None, expansion=1)."""
    N, C, L = x_ncl.shape
    w1, w2, w3 = params["w1"], params["w2"], params["w3"]   # (K, Cin, Cout)
    K1, C1, P1 = w1.shape
    K2, C2, P2 = w2.shape
    K3, C3, P3 = w3.shape
    for K in (K1, K2, K3):
        assert K % 2 == 1, "'same' padding via (K-1)//2 requires an odd kernel"
    assert C1 == C and C2 == P1 and C3 == P2, "channel chain mismatch"
    assert P3 == C, "residual add requires conv3 Cout == inplanes"

    def flat_w(w):          # (K, Cin, Cout) -> (Cout, K*Cin)
        kk, cin, cout = w.shape
        return jnp.transpose(w, (2, 0, 1)).reshape(cout, kk * cin).astype(
            jnp.float32)

    def col(v):             # per-channel vector -> (Cout, 1) column
        return v.reshape(-1, 1).astype(jnp.float32)

    args = [x_ncl, flat_w(w1), flat_w(w2), flat_w(w3),
            col(params["s1"]), col(params["b1"]),
            col(params["s2"]), col(params["b2"]),
            col(params["s3"]), col(params["b3"])]

    full2d = lambda n: (0, 0)
    in_specs = [
        pl.BlockSpec((1, C, L), lambda n: (n, 0, 0)),       # x (NCL)
        pl.BlockSpec((P1, K1 * C1), full2d),                # w1 flat
        pl.BlockSpec((P2, K2 * C2), full2d),                # w2 flat
        pl.BlockSpec((P3, K3 * C3), full2d),                # w3 flat
        pl.BlockSpec((P1, 1), full2d), pl.BlockSpec((P1, 1), full2d),
        pl.BlockSpec((P2, 1), full2d), pl.BlockSpec((P2, 1), full2d),
        pl.BlockSpec((P3, 1), full2d), pl.BlockSpec((P3, 1), full2d),
    ]

    kernel = functools.partial(_bottleneck_kernel, K1=K1, K2=K2, K3=K3)
    return pl.pallas_call(
        kernel,
        out_shape=jax.ShapeDtypeStruct((N, C, L), x_ncl.dtype),
        grid_spec=pltpu.PrefetchScalarGridSpec(
            num_scalar_prefetch=0,
            grid=(N,),      # 2-wide parallel batch axis -> feeds both v7x TCs
            in_specs=in_specs,
            out_specs=pl.BlockSpec((1, C, L), lambda n: (n, 0, 0)),
        ),
        compiler_params=pltpu.CompilerParams(
            dimension_semantics=("parallel",)),
    )(*args)


# ----------------------- Deterministic parameter init ---------------------- #

def _fold_bn(gamma, beta, mean, var, eps=1e-5):
    scale = gamma / jnp.sqrt(var + eps)
    shift = beta - mean * scale
    return scale, shift


def init_params(key, inplanes, planes):
    expansion = 1
    ks = jax.random.split(key, 15)

    def conv_w(k, cout, cin, ksz):
        # PyTorch weight layout is (Cout, Cin, K); stored here as (K, Cin, Cout).
        w = jax.random.normal(k, (cout, cin, ksz), jnp.float32)
        w = w * (1.0 / jnp.sqrt(cin * ksz))
        return jnp.transpose(w, (2, 1, 0))

    def bn(kg, kb, km, kv, c):
        gamma = 0.5 + jax.random.uniform(kg, (c,), jnp.float32)
        beta = 0.1 * jax.random.normal(kb, (c,), jnp.float32)
        mean = 0.1 * jax.random.normal(km, (c,), jnp.float32)
        var = 0.5 + jax.random.uniform(kv, (c,), jnp.float32)
        return _fold_bn(gamma, beta, mean, var)

    params = {}
    params["w1"] = conv_w(ks[0], planes, inplanes, 15)        # conv1: k=15, pad=7
    params["s1"], params["b1"] = bn(ks[1], ks[2], ks[3], ks[4], planes)
    params["w2"] = conv_w(ks[5], planes, planes, 31)          # conv2: k=31, pad=15
    params["s2"], params["b2"] = bn(ks[6], ks[7], ks[8], ks[9], planes)
    params["w3"] = conv_w(ks[10], planes * expansion, planes, 15)  # conv3: k=15
    params["s3"], params["b3"] = bn(ks[11], ks[12], ks[13], ks[14],
                                    planes * expansion)
    return params


# ------------------------------ Reference ---------------------------------- #

def _reference_forward(x_ncl, params):
    """Pure-JAX reference (NCL conv via lax.conv_general_dilated)."""
    def conv(x, w_kio, pad):
        w_oik = jnp.transpose(w_kio, (2, 1, 0))  # (Cout, Cin, K)
        return jax.lax.conv_general_dilated(
            x, w_oik, window_strides=(1,), padding=[(pad, pad)],
            dimension_numbers=("NCH", "OIH", "NCH"),
            precision=jax.lax.Precision.HIGHEST)

    def bn(x, scale, shift):
        return x * scale[None, :, None] + shift[None, :, None]

    out = jax.nn.relu(bn(conv(x_ncl, params["w1"], 7), params["s1"], params["b1"]))
    out = jax.nn.relu(bn(conv(out, params["w2"], 15), params["s2"], params["b2"]))
    out = bn(conv(out, params["w3"], 7), params["s3"], params["b3"])
    return jax.nn.relu(out + x_ncl)


# --------------------------------- Main ------------------------------------ #

if __name__ == "__main__":
    key = jax.random.PRNGKey(0)
    k_x, k_p = jax.random.split(key)

    N, C, L = 2, 8, 64          # small NCL input; inplanes == planes (no downsample)
    inplanes = planes = C

    x = jax.random.normal(k_x, (N, C, L), jnp.float32)
    params = init_params(k_p, inplanes, planes)

    out = bottleneck_forward(x, params)
    out = jax.block_until_ready(out)

    ref = jax.block_until_ready(_reference_forward(x, params))
    assert out.shape == (N, C, L)
    assert jnp.allclose(out, ref, atol=1e-2, rtol=1e-2), "mismatch vs reference"

    print("KERNEL_OK")
</pallas_src>

<mosaic_0001>
module attributes {stable_mosaic.version = 11 : i64} {
  func.func @_bottleneck_kernel(%arg0: i32, %arg1: memref<1x8x64xf32, #tpu.memory_space<vmem>>, %arg2: memref<8x120xf32, #tpu.memory_space<vmem>>, %arg3: memref<8x248xf32, #tpu.memory_space<vmem>>, %arg4: memref<8x120xf32, #tpu.memory_space<vmem>>, %arg5: memref<8x1xf32, #tpu.memory_space<vmem>>, %arg6: memref<8x1xf32, #tpu.memory_space<vmem>>, %arg7: memref<8x1xf32, #tpu.memory_space<vmem>>, %arg8: memref<8x1xf32, #tpu.memory_space<vmem>>, %arg9: memref<8x1xf32, #tpu.memory_space<vmem>>, %arg10: memref<8x1xf32, #tpu.memory_space<vmem>>, %arg11: memref<1x8x64xf32, #tpu.memory_space<vmem>>) attributes {dimension_semantics = [#tpu.dimension_semantics<parallel>], iteration_bounds = array<i64: 2>, scalar_prefetch = 0 : i64, scratch_operands = 0 : i64, tpu.core_type = #tpu.core_type<tc>, window_params = [{transform_indices = @transform_0, window_bounds = array<i64: 1, 8, 64>}, {pipeline_mode = #tpu.pipeline_mode<synchronous>, transform_indices = @transform_1, window_bounds = array<i64: 8, 120>}, {pipeline_mode = #tpu.pipeline_mode<synchronous>, transform_indices = @transform_2, window_bounds = array<i64: 8, 248>}, {pipeline_mode = #tpu.pipeline_mode<synchronous>, transform_indices = @transform_3, window_bounds = array<i64: 8, 120>}, {pipeline_mode = #tpu.pipeline_mode<synchronous>, transform_indices = @transform_4, window_bounds = array<i64: 8, 1>}, {pipeline_mode = #tpu.pipeline_mode<synchronous>, transform_indices = @transform_5, window_bounds = array<i64: 8, 1>}, {pipeline_mode = #tpu.pipeline_mode<synchronous>, transform_indices = @transform_6, window_bounds = array<i64: 8, 1>}, {pipeline_mode = #tpu.pipeline_mode<synchronous>, transform_indices = @transform_7, window_bounds = array<i64: 8, 1>}, {pipeline_mode = #tpu.pipeline_mode<synchronous>, transform_indices = @transform_8, window_bounds = array<i64: 8, 1>}, {pipeline_mode = #tpu.pipeline_mode<synchronous>, transform_indices = @transform_9, window_bounds = array<i64: 8, 1>}, {transform_indices = @transform_10, window_bounds = array<i64: 1, 8, 64>}]} {
    %c0 = arith.constant 0 : index
    %c0_0 = arith.constant 0 : index
    %c0_1 = arith.constant 0 : index
    %0 = vector.load %arg1[%c0, %c0_0, %c0_1] : memref<1x8x64xf32, #tpu.memory_space<vmem>>, vector<1x8x64xf32>
    %1 = vector.shape_cast %0 : vector<1x8x64xf32> to vector<8x64xf32>
    %cst = arith.constant 0.000000e+00 : f32
    %2 = vector.broadcast %cst : f32 to vector<8x7xf32>
    %3 = tpu.concatenate %2, %1, %2 in 1 : vector<8x7xf32>, vector<8x64xf32>, vector<8x7xf32> -> vector<8x78xf32>
    %4 = vector.extract_strided_slice %3 {offsets = [0, 0], sizes = [8, 64], strides = [1, 1]} : vector<8x78xf32> to vector<8x64xf32>
    %5 = vector.extract_strided_slice %3 {offsets = [0, 1], sizes = [8, 64], strides = [1, 1]} : vector<8x78xf32> to vector<8x64xf32>
    %6 = vector.extract_strided_slice %3 {offsets = [0, 2], sizes = [8, 64], strides = [1, 1]} : vector<8x78xf32> to vector<8x64xf32>
    %7 = vector.extract_strided_slice %3 {offsets = [0, 3], sizes = [8, 64], strides = [1, 1]} : vector<8x78xf32> to vector<8x64xf32>
    %8 = vector.extract_strided_slice %3 {offsets = [0, 4], sizes = [8, 64], strides = [1, 1]} : vector<8x78xf32> to vector<8x64xf32>
    %9 = vector.extract_strided_slice %3 {offsets = [0, 5], sizes = [8, 64], strides = [1, 1]} : vector<8x78xf32> to vector<8x64xf32>
    %10 = vector.extract_strided_slice %3 {offsets = [0, 6], sizes = [8, 64], strides = [1, 1]} : vector<8x78xf32> to vector<8x64xf32>
    %11 = vector.extract_strided_slice %3 {offsets = [0, 7], sizes = [8, 64], strides = [1, 1]} : vector<8x78xf32> to vector<8x64xf32>
    %12 = vector.extract_strided_slice %3 {offsets = [0, 8], sizes = [8, 64], strides = [1, 1]} : vector<8x78xf32> to vector<8x64xf32>
    %13 = vector.extract_strided_slice %3 {offsets = [0, 9], sizes = [8, 64], strides = [1, 1]} : vector<8x78xf32> to vector<8x64xf32>
    %14 = vector.extract_strided_slice %3 {offsets = [0, 10], sizes = [8, 64], strides = [1, 1]} : vector<8x78xf32> to vector<8x64xf32>
    %15 = vector.extract_strided_slice %3 {offsets = [0, 11], sizes = [8, 64], strides = [1, 1]} : vector<8x78xf32> to vector<8x64xf32>
    %16 = vector.extract_strided_slice %3 {offsets = [0, 12], sizes = [8, 64], strides = [1, 1]} : vector<8x78xf32> to vector<8x64xf32>
    %17 = vector.extract_strided_slice %3 {offsets = [0, 13], sizes = [8, 64], strides = [1, 1]} : vector<8x78xf32> to vector<8x64xf32>
    %18 = vector.extract_strided_slice %3 {offsets = [0, 14], sizes = [8, 64], strides = [1, 1]} : vector<8x78xf32> to vector<8x64xf32>
    %19 = tpu.concatenate %4, %5, %6, %7, %8, %9, %10, %11, %12, %13, %14, %15, %16, %17, %18 in 0 : vector<8x64xf32>, vector<8x64xf32>, vector<8x64xf32>, vector<8x64xf32>, vector<8x64xf32>, vector<8x64xf32>, vector<8x64xf32>, vector<8x64xf32>, vector<8x64xf32>, vector<8x64xf32>, vector<8x64xf32>, vector<8x64xf32>, vector<8x64xf32>, vector<8x64xf32>, vector<8x64xf32> -> vector<120x64xf32>
    %c0_2 = arith.constant 0 : index
    %c0_3 = arith.constant 0 : index
    %20 = vector.load %arg2[%c0_2, %c0_3] : memref<8x120xf32, #tpu.memory_space<vmem>>, vector<8x120xf32>
    %cst_4 = arith.constant dense<0.000000e+00> : vector<8x64xf32>
    %21 = tpu.matmul %20, %19, %cst_4 {dimension_numbers = #tpu.dot_dimension_numbers<[1], [0], [0], [1], [0, 0, 1, 1], [], []>} : vector<8x120xf32>, vector<120x64xf32>, vector<8x64xf32> -> vector<8x64xf32>
    %c0_5 = arith.constant 0 : index
    %c0_6 = arith.constant 0 : index
    %22 = vector.load %arg5[%c0_5, %c0_6] : memref<8x1xf32, #tpu.memory_space<vmem>>, vector<8x1xf32>
    %23 = vector.broadcast %22 : vector<8x1xf32> to vector<8x64xf32>
    %24 = arith.mulf %21, %23 : vector<8x64xf32>
    %c0_7 = arith.constant 0 : index
    %c0_8 = arith.constant 0 : index
    %25 = vector.load %arg6[%c0_7, %c0_8] : memref<8x1xf32, #tpu.memory_space<vmem>>, vector<8x1xf32>
    %26 = vector.broadcast %25 : vector<8x1xf32> to vector<8x64xf32>
    %27 = arith.addf %24, %26 : vector<8x64xf32>
    %cst_9 = arith.constant 0.000000e+00 : f32
    %28 = vector.broadcast %cst_9 : f32 to vector<8x64xf32>
    %29 = arith.maximumf %27, %28 : vector<8x64xf32>
    %cst_10 = arith.constant 0.000000e+00 : f32
    %30 = vector.broadcast %cst_10 : f32 to vector<8x15xf32>
    %31 = tpu.concatenate %30, %29, %30 in 1 : vector<8x15xf32>, vector<8x64xf32>, vector<8x15xf32> -> vector<8x94xf32>
    %32 = vector.extract_strided_slice %31 {offsets = [0, 0], sizes = [8, 64], strides = [1, 1]} : vector<8x94xf32> to vector<8x64xf32>
    %33 = vector.extract_strided_slice %31 {offsets = [0, 1], sizes = [8, 64], strides = [1, 1]} : vector<8x94xf32> to vector<8x64xf32>
    %34 = vector.extract_strided_slice %31 {offsets = [0, 2], sizes = [8, 64], strides = [1, 1]} : vector<8x94xf32> to vector<8x64xf32>
    %35 = vector.extract_strided_slice %31 {offsets = [0, 3], sizes = [8, 64], strides = [1, 1]} : vector<8x94xf32> to vector<8x64xf32>
    %36 = vector.extract_strided_slice %31 {offsets = [0, 4], sizes = [8, 64], strides = [1, 1]} : vector<8x94xf32> to vector<8x64xf32>
    %37 = vector.extract_strided_slice %31 {offsets = [0, 5], sizes = [8, 64], strides = [1, 1]} : vector<8x94xf32> to vector<8x64xf32>
    %38 = vector.extract_strided_slice %31 {offsets = [0, 6], sizes = [8, 64], strides = [1, 1]} : vector<8x94xf32> to vector<8x64xf32>
    %39 = vector.extract_strided_slice %31 {offsets = [0, 7], sizes = [8, 64], strides = [1, 1]} : vector<8x94xf32> to vector<8x64xf32>
    %40 = vector.extract_strided_slice %31 {offsets = [0, 8], sizes = [8, 64], strides = [1, 1]} : vector<8x94xf32> to vector<8x64xf32>
    %41 = vector.extract_strided_slice %31 {offsets = [0, 9], sizes = [8, 64], strides = [1, 1]} : vector<8x94xf32> to vector<8x64xf32>
    %42 = vector.extract_strided_slice %31 {offsets = [0, 10], sizes = [8, 64], strides = [1, 1]} : vector<8x94xf32> to vector<8x64xf32>
    %43 = vector.extract_strided_slice %31 {offsets = [0, 11], sizes = [8, 64], strides = [1, 1]} : vector<8x94xf32> to vector<8x64xf32>
    %44 = vector.extract_strided_slice %31 {offsets = [0, 12], sizes = [8, 64], strides = [1, 1]} : vector<8x94xf32> to vector<8x64xf32>
    %45 = vector.extract_strided_slice %31 {offsets = [0, 13], sizes = [8, 64], strides = [1, 1]} : vector<8x94xf32> to vector<8x64xf32>
    %46 = vector.extract_strided_slice %31 {offsets = [0, 14], sizes = [8, 64], strides = [1, 1]} : vector<8x94xf32> to vector<8x64xf32>
    %47 = vector.extract_strided_slice %31 {offsets = [0, 15], sizes = [8, 64], strides = [1, 1]} : vector<8x94xf32> to vector<8x64xf32>
    %48 = vector.extract_strided_slice %31 {offsets = [0, 16], sizes = [8, 64], strides = [1, 1]} : vector<8x94xf32> to vector<8x64xf32>
    %49 = vector.extract_strided_slice %31 {offsets = [0, 17], sizes = [8, 64], strides = [1, 1]} : vector<8x94xf32> to vector<8x64xf32>
    %50 = vector.extract_strided_slice %31 {offsets = [0, 18], sizes = [8, 64], strides = [1, 1]} : vector<8x94xf32> to vector<8x64xf32>
    %51 = vector.extract_strided_slice %31 {offsets = [0, 19], sizes = [8, 64], strides = [1, 1]} : vector<8x94xf32> to vector<8x64xf32>
    %52 = vector.extract_strided_slice %31 {offsets = [0, 20], sizes = [8, 64], strides = [1, 1]} : vector<8x94xf32> to vector<8x64xf32>
    %53 = vector.extract_strided_slice %31 {offsets = [0, 21], sizes = [8, 64], strides = [1, 1]} : vector<8x94xf32> to vector<8x64xf32>
    %54 = vector.extract_strided_slice %31 {offsets = [0, 22], sizes = [8, 64], strides = [1, 1]} : vector<8x94xf32> to vector<8x64xf32>
    %55 = vector.extract_strided_slice %31 {offsets = [0, 23], sizes = [8, 64], strides = [1, 1]} : vector<8x94xf32> to vector<8x64xf32>
    %56 = vector.extract_strided_slice %31 {offsets = [0, 24], sizes = [8, 64], strides = [1, 1]} : vector<8x94xf32> to vector<8x64xf32>
    %57 = vector.extract_strided_slice %31 {offsets = [0, 25], sizes = [8, 64], strides = [1, 1]} : vector<8x94xf32> to vector<8x64xf32>
    %58 = vector.extract_strided_slice %31 {offsets = [0, 26], sizes = [8, 64], strides = [1, 1]} : vector<8x94xf32> to vector<8x64xf32>
    %59 = vector.extract_strided_slice %31 {offsets = [0, 27], sizes = [8, 64], strides = [1, 1]} : vector<8x94xf32> to vector<8x64xf32>
    %60 = vector.extract_strided_slice %31 {offsets = [0, 28], sizes = [8, 64], strides = [1, 1]} : vector<8x94xf32> to vector<8x64xf32>
    %61 = vector.extract_strided_slice %31 {offsets = [0, 29], sizes = [8, 64], strides = [1, 1]} : vector<8x94xf32> to vector<8x64xf32>
    %62 = vector.extract_strided_slice %31 {offsets = [0, 30], sizes = [8, 64], strides = [1, 1]} : vector<8x94xf32> to vector<8x64xf32>
    %63 = tpu.concatenate %32, %33, %34, %35, %36, %37, %38, %39, %40, %41, %42, %43, %44, %45, %46, %47 in 0 : vector<8x64xf32>, vector<8x64xf32>, vector<8x64xf32>, vector<8x64xf32>, vector<8x64xf32>, vector<8x64xf32>, vector<8x64xf32>, vector<8x64xf32>, vector<8x64xf32>, vector<8x64xf32>, vector<8x64xf32>, vector<8x64xf32>, vector<8x64xf32>, vector<8x64xf32>, vector<8x64xf32>, vector<8x64xf32> -> vector<128x64xf32>
    %64 = tpu.concatenate %48, %49, %50, %51, %52, %53, %54, %55, %56, %57, %58, %59, %60, %61, %62 in 0 : vector<8x64xf32>, vector<8x64xf32>, vector<8x64xf32>, vector<8x64xf32>, vector<8x64xf32>, vector<8x64xf32>, vector<8x64xf32>, vector<8x64xf32>, vector<8x64xf32>, vector<8x64xf32>, vector<8x64xf32>, vector<8x64xf32>, vector<8x64xf32>, vector<8x64xf32>, vector<8x64xf32> -> vector<120x64xf32>
    %65 = tpu.concatenate %63, %64 in 0 : vector<128x64xf32>, vector<120x64xf32> -> vector<248x64xf32>
    %c0_11 = arith.constant 0 : index
    %c0_12 = arith.constant 0 : index
    %66 = vector.load %arg3[%c0_11, %c0_12] : memref<8x248xf32, #tpu.memory_space<vmem>>, vector<8x248xf32>
    %cst_13 = arith.constant dense<0.000000e+00> : vector<8x64xf32>
    %67 = tpu.matmul %66, %65, %cst_13 {dimension_numbers = #tpu.dot_dimension_numbers<[1], [0], [0], [1], [0, 0, 1, 1], [], []>} : vector<8x248xf32>, vector<248x64xf32>, vector<8x64xf32> -> vector<8x64xf32>
    %c0_14 = arith.constant 0 : index
    %c0_15 = arith.constant 0 : index
    %68 = vector.load %arg7[%c0_14, %c0_15] : memref<8x1xf32, #tpu.memory_space<vmem>>, vector<8x1xf32>
    %69 = vector.broadcast %68 : vector<8x1xf32> to vector<8x64xf32>
    %70 = arith.mulf %67, %69 : vector<8x64xf32>
    %c0_16 = arith.constant 0 : index
    %c0_17 = arith.constant 0 : index
    %71 = vector.load %arg8[%c0_16, %c0_17] : memref<8x1xf32, #tpu.memory_space<vmem>>, vector<8x1xf32>
    %72 = vector.broadcast %71 : vector<8x1xf32> to vector<8x64xf32>
    %73 = arith.addf %70, %72 : vector<8x64xf32>
    %cst_18 = arith.constant 0.000000e+00 : f32
    %74 = vector.broadcast %cst_18 : f32 to vector<8x64xf32>
    %75 = arith.maximumf %73, %74 : vector<8x64xf32>
    %cst_19 = arith.constant 0.000000e+00 : f32
    %76 = vector.broadcast %cst_19 : f32 to vector<8x7xf32>
    %77 = tpu.concatenate %76, %75, %76 in 1 : vector<8x7xf32>, vector<8x64xf32>, vector<8x7xf32> -> vector<8x78xf32>
    %78 = vector.extract_strided_slice %77 {offsets = [0, 0], sizes = [8, 64], strides = [1, 1]} : vector<8x78xf32> to vector<8x64xf32>
    %79 = vector.extract_strided_slice %77 {offsets = [0, 1], sizes = [8, 64], strides = [1, 1]} : vector<8x78xf32> to vector<8x64xf32>
    %80 = vector.extract_strided_slice %77 {offsets = [0, 2], sizes = [8, 64], strides = [1, 1]} : vector<8x78xf32> to vector<8x64xf32>
    %81 = vector.extract_strided_slice %77 {offsets = [0, 3], sizes = [8, 64], strides = [1, 1]} : vector<8x78xf32> to vector<8x64xf32>
    %82 = vector.extract_strided_slice %77 {offsets = [0, 4], sizes = [8, 64], strides = [1, 1]} : vector<8x78xf32> to vector<8x64xf32>
    %83 = vector.extract_strided_slice %77 {offsets = [0, 5], sizes = [8, 64], strides = [1, 1]} : vector<8x78xf32> to vector<8x64xf32>
    %84 = vector.extract_strided_slice %77 {offsets = [0, 6], sizes = [8, 64], strides = [1, 1]} : vector<8x78xf32> to vector<8x64xf32>
    %85 = vector.extract_strided_slice %77 {offsets = [0, 7], sizes = [8, 64], strides = [1, 1]} : vector<8x78xf32> to vector<8x64xf32>
    %86 = vector.extract_strided_slice %77 {offsets = [0, 8], sizes = [8, 64], strides = [1, 1]} : vector<8x78xf32> to vector<8x64xf32>
    %87 = vector.extract_strided_slice %77 {offsets = [0, 9], sizes = [8, 64], strides = [1, 1]} : vector<8x78xf32> to vector<8x64xf32>
    %88 = vector.extract_strided_slice %77 {offsets = [0, 10], sizes = [8, 64], strides = [1, 1]} : vector<8x78xf32> to vector<8x64xf32>
    %89 = vector.extract_strided_slice %77 {offsets = [0, 11], sizes = [8, 64], strides = [1, 1]} : vector<8x78xf32> to vector<8x64xf32>
    %90 = vector.extract_strided_slice %77 {offsets = [0, 12], sizes = [8, 64], strides = [1, 1]} : vector<8x78xf32> to vector<8x64xf32>
    %91 = vector.extract_strided_slice %77 {offsets = [0, 13], sizes = [8, 64], strides = [1, 1]} : vector<8x78xf32> to vector<8x64xf32>
    %92 = vector.extract_strided_slice %77 {offsets = [0, 14], sizes = [8, 64], strides = [1, 1]} : vector<8x78xf32> to vector<8x64xf32>
    %93 = tpu.concatenate %78, %79, %80, %81, %82, %83, %84, %85, %86, %87, %88, %89, %90, %91, %92 in 0 : vector<8x64xf32>, vector<8x64xf32>, vector<8x64xf32>, vector<8x64xf32>, vector<8x64xf32>, vector<8x64xf32>, vector<8x64xf32>, vector<8x64xf32>, vector<8x64xf32>, vector<8x64xf32>, vector<8x64xf32>, vector<8x64xf32>, vector<8x64xf32>, vector<8x64xf32>, vector<8x64xf32> -> vector<120x64xf32>
    %c0_20 = arith.constant 0 : index
    %c0_21 = arith.constant 0 : index
    %94 = vector.load %arg4[%c0_20, %c0_21] : memref<8x120xf32, #tpu.memory_space<vmem>>, vector<8x120xf32>
    %cst_22 = arith.constant dense<0.000000e+00> : vector<8x64xf32>
    %95 = tpu.matmul %94, %93, %cst_22 {dimension_numbers = #tpu.dot_dimension_numbers<[1], [0], [0], [1], [0, 0, 1, 1], [], []>} : vector<8x120xf32>, vector<120x64xf32>, vector<8x64xf32> -> vector<8x64xf32>
    %c0_23 = arith.constant 0 : index
    %c0_24 = arith.constant 0 : index
    %96 = vector.load %arg9[%c0_23, %c0_24] : memref<8x1xf32, #tpu.memory_space<vmem>>, vector<8x1xf32>
    %97 = vector.broadcast %96 : vector<8x1xf32> to vector<8x64xf32>
    %98 = arith.mulf %95, %97 : vector<8x64xf32>
    %c0_25 = arith.constant 0 : index
    %c0_26 = arith.constant 0 : index
    %99 = vector.load %arg10[%c0_25, %c0_26] : memref<8x1xf32, #tpu.memory_space<vmem>>, vector<8x1xf32>
    %100 = vector.broadcast %99 : vector<8x1xf32> to vector<8x64xf32>
    %101 = arith.addf %98, %100 : vector<8x64xf32>
    %102 = arith.addf %101, %1 : vector<8x64xf32>
    %cst_27 = arith.constant 0.000000e+00 : f32
    %103 = vector.broadcast %cst_27 : f32 to vector<8x64xf32>
    %104 = arith.maximumf %102, %103 : vector<8x64xf32>
    %c0_28 = arith.constant 0 : index
    %c0_29 = arith.constant 0 : index
    %c0_30 = arith.constant 0 : index
    %105 = vector.load %arg11[%c0_28, %c0_29, %c0_30] : memref<1x8x64xf32, #tpu.memory_space<vmem>>, vector<1x8x64xf32>
    %106 = vector.shape_cast %105 : vector<1x8x64xf32> to vector<8x64xf32>
    %107 = vector.shape_cast %104 : vector<8x64xf32> to vector<1x8x64xf32>
    tpu.vector_store %arg11[%c0_28, %c0_29, %c0_30], %107 {strides = array<i32>} : memref<1x8x64xf32, #tpu.memory_space<vmem>>, vector<1x8x64xf32>,
    return
  }
  func.func @transform_0(%arg0: i32) -> (i32, i32, i32) {
    %c0_i32 = arith.constant 0 : i32
    %c0_i32_0 = arith.constant 0 : i32
    %c0_i32_1 = arith.constant 0 : i32
    return %arg0, %c0_i32, %c0_i32_0 : i32, i32, i32
  }
  func.func @transform_1(%arg0: i32) -> (i32, i32) {
    %c0_i32 = arith.constant 0 : i32
    %c0_i32_0 = arith.constant 0 : i32
    %c0_i32_1 = arith.constant 0 : i32
    return %c0_i32, %c0_i32_0 : i32, i32
  }
  func.func @transform_2(%arg0: i32) -> (i32, i32) {
    %c0_i32 = arith.constant 0 : i32
    %c0_i32_0 = arith.constant 0 : i32
    %c0_i32_1 = arith.constant 0 : i32
    return %c0_i32, %c0_i32_0 : i32, i32
  }
  func.func @transform_3(%arg0: i32) -> (i32, i32) {
    %c0_i32 = arith.constant 0 : i32
    %c0_i32_0 = arith.constant 0 : i32
    %c0_i32_1 = arith.constant 0 : i32
    return %c0_i32, %c0_i32_0 : i32, i32
  }
  func.func @transform_4(%arg0: i32) -> (i32, i32) {
    %c0_i32 = arith.constant 0 : i32
    %c0_i32_0 = arith.constant 0 : i32
    %c0_i32_1 = arith.constant 0 : i32
    return %c0_i32, %c0_i32_0 : i32, i32
  }
  func.func @transform_5(%arg0: i32) -> (i32, i32) {
    %c0_i32 = arith.constant 0 : i32
    %c0_i32_0 = arith.constant 0 : i32
    %c0_i32_1 = arith.constant 0 : i32
    return %c0_i32, %c0_i32_0 : i32, i32
  }
  func.func @transform_6(%arg0: i32) -> (i32, i32) {
    %c0_i32 = arith.constant 0 : i32
    %c0_i32_0 = arith.constant 0 : i32
    %c0_i32_1 = arith.constant 0 : i32
    return %c0_i32, %c0_i32_0 : i32, i32
  }
  func.func @transform_7(%arg0: i32) -> (i32, i32) {
    %c0_i32 = arith.constant 0 : i32
    %c0_i32_0 = arith.constant 0 : i32
    %c0_i32_1 = arith.constant 0 : i32
    return %c0_i32, %c0_i32_0 : i32, i32
  }
  func.func @transform_8(%arg0: i32) -> (i32, i32) {
    %c0_i32 = arith.constant 0 : i32
    %c0_i32_0 = arith.constant 0 : i32
    %c0_i32_1 = arith.constant 0 : i32
    return %c0_i32, %c0_i32_0 : i32, i32
  }
  func.func @transform_9(%arg0: i32) -> (i32, i32) {
    %c0_i32 = arith.constant 0 : i32
    %c0_i32_0 = arith.constant 0 : i32
    %c0_i32_1 = arith.constant 0 : i32
    return %c0_i32, %c0_i32_0 : i32, i32
  }
  func.func @transform_10(%arg0: i32) -> (i32, i32, i32) {
    %c0_i32 = arith.constant 0 : i32
    %c0_i32_0 = arith.constant 0 : i32
    %c0_i32_1 = arith.constant 0 : i32
    return %arg0, %c0_i32, %c0_i32_0 : i32, i32, i32
  }
}

</mosaic_0001>

<llo_original>
// kernel: tpu_custom_call.1
$region0: #{tpu_custom_call.1}
  #allocation0 [shape = 'u32[]', space=smem, size = 0x4, offset = 0x4, fixed_abs, tag = 'smem constant byte address 0x4 - core index']
  #allocation1 [shape = 'u32[144,128]{1,0:T(1,128)}', space=vmem, size = 0x12000, scoped, tag = 'internal scratch']
  %s0 = inlined_call_operand.vmem [shape: f32[2,8,64], index: 0, kind: input, shape index: {}]
  %s1 = inlined_call_operand.vmem [shape: f32[8,120], index: 1, kind: input, shape index: {}]
  %s2 = inlined_call_operand.vmem [shape: f32[8,248], index: 2, kind: input, shape index: {}]
  %s3 = inlined_call_operand.vmem [shape: f32[8,120], index: 3, kind: input, shape index: {}]
  %s4 = inlined_call_operand.vmem [shape: f32[8,1], index: 4, kind: input, shape index: {}]
  %s5 = inlined_call_operand.vmem [shape: f32[8,1], index: 5, kind: input, shape index: {}]
  %s6 = inlined_call_operand.vmem [shape: f32[8,1], index: 6, kind: input, shape index: {}]
  %s7 = inlined_call_operand.vmem [shape: f32[8,1], index: 7, kind: input, shape index: {}]
  %s8 = inlined_call_operand.vmem [shape: f32[8,1], index: 8, kind: input, shape index: {}]
  %s9 = inlined_call_operand.vmem [shape: f32[8,1], index: 9, kind: input, shape index: {}]
  %s10 = inlined_call_operand.hbm [shape: f32[2,8,64], index: 10, kind: output, shape index: {}]
  %s11 = sld [smem:[#allocation0]]
  $region73: #{tpu_custom_call.1} parent=0
    _
  %s13 = ssub.s32 1, %s11
  %s14 = scalar_select 0, %s13, %s11
  $region1: #{tpu_custom_call.1} parent=0
    #allocation2 [shape = 'u8[8192]{0}', space=vmem, size = 0x2000, scoped, tag = 'output window, operand 0']
    #allocation3 [shape = 's32[2]{0}', space=sflag, size = 0x8, scoped, tag = 'scoped memory for tpu_custom_call.1']
    %15 = vsyncpa [#allocation3], 0
    %s16 = scalar_lea.sflag [#allocation3], 1
    %17 = vsyncpa %s16, 0
    loop: start=0, step=1, limit=4
    $region2: #{tpu_custom_call.1} parent=1 // loop_pre_header
      _
    $region3: #{tpu_custom_call.1} parent=1 // loop_header
      %s19 = sphi 0, %s23
      %p20 = scmp.ge.s32.totalorder %s19, 4
      %s29 = sphi 0, %s31
      %s32 = sphi 0, %s29
      %s33 = sphi 0, %s32
      %s49 = sphi 0, %s33
      %s53 = sphi 0, %s53
      %s55 = sphi 0, %s53
      %s56 = sphi 0, %s55
      %s70 = sphi 0, %s56
      %s74 = sphi 0, %s74
      %s76 = sphi 0, %s74
      %s77 = sphi 0, %s76
      %s91 = sphi 0, %s77
      %s95 = sphi 0, %s95
      %s97 = sphi 0, %s95
      %s98 = sphi 0, %s97
      %s112 = sphi 0, %s98
      %s116 = sphi 0, %s116
      %s118 = sphi 0, %s116
      %s119 = sphi 0, %s118
      %s133 = sphi 0, %s119
      %s137 = sphi 0, %s137
      %s139 = sphi 0, %s137
      %s140 = sphi 0, %s139
      %s154 = sphi 0, %s140
      %s158 = sphi 0, %s158
      %s160 = sphi 0, %s158
      %s161 = sphi 0, %s160
      %s175 = sphi 0, %s161
      %s179 = sphi 0, %s179
      %s181 = sphi 0, %s179
      %s182 = sphi 0, %s181
      %s196 = sphi 0, %s182
      %s200 = sphi 0, %s200
      %s202 = sphi 0, %s200
      %s203 = sphi 0, %s202
      %s217 = sphi 0, %s203
      %s221 = sphi 0, %s221
      %s223 = sphi 0, %s221
      %s224 = sphi 0, %s223
      %s238 = sphi 0, %s224
      %s244 = sphi 0, %s246
      %s247 = sphi 0, %s244
      %s248 = sphi 0, %s247
      %s264 = sphi 0, %s248
    $region4: #{tpu_custom_call.1} parent=1 // loop_header_branch
      %22 = sbr.rel (%p20) target = $region8
    $region5: #{tpu_custom_call.1} parent=1 // loop_body
      %s24 = ssub.s32 %s19, 1
      %s25 = ssub.s32 %s19, 2
      %s26 = sadd.s32 %s19, 1
      %s27 = ssub.s32 %s19, %s26
      %p28 = scmp.eq.s32.totalorder %s27, 0
      %s30 = sadd.s32 %s29, 1
      %s31 = scalar_select %p28, %s29, %s30
      %p34 = pneg %p28
      %p35 = scmp.eq.s32.totalorder %s19, 1
      %p36 = por %p34, %p35
      %p37 = scmp.ne.s32.totalorder %s29, %s32
      %p38 = scmp.eq.s32.totalorder %s19, 0
      %p39 = por %p37, %p38
      %p40 = scmp.ne.s32.totalorder %s29, %s32
      %p41 = scmp.eq.s32.totalorder %s24, 1
      %p42 = por %p40, %p41
      %p43 = scmp.ne.s32.totalorder %s32, %s33
      %p44 = scmp.eq.s32.totalorder %s24, 0
      %p45 = por %p43, %p44
      %p46 = scmp.ne.s32.totalorder %s32, %s33
      %p47 = scmp.eq.s32.totalorder %s25, 1
      %p48 = por %p46, %p47
      %p50 = scmp.ne.s32.totalorder %s33, %s49
      %p51 = scmp.eq.s32.totalorder %s25, 0
      %p52 = por %p50, %p51
      %s54 = sadd.s32 %s53, 1
      %p57 = scmp.eq.s32.totalorder %s19, 1
      %p58 = scmp.ne.s32.totalorder %s53, %s55
      %p59 = scmp.eq.s32.totalorder %s19, 0
      %p60 = por %p58, %p59
      %p61 = scmp.ne.s32.totalorder %s53, %s55
      %p62 = scmp.eq.s32.totalorder %s24, 1
      %p63 = por %p61, %p62
      %p64 = scmp.ne.s32.totalorder %s55, %s56
      %p65 = scmp.eq.s32.totalorder %s24, 0
      %p66 = por %p64, %p65
      %p67 = scmp.ne.s32.totalorder %s55, %s56
      %p68 = scmp.eq.s32.totalorder %s25, 1
      %p69 = por %p67, %p68
      %p71 = scmp.ne.s32.totalorder %s56, %s70
      %p72 = scmp.eq.s32.totalorder %s25, 0
      %p73 = por %p71, %p72
      %s75 = sadd.s32 %s74, 1
      %p78 = scmp.eq.s32.totalorder %s19, 1
      %p79 = scmp.ne.s32.totalorder %s74, %s76
      %p80 = scmp.eq.s32.totalorder %s19, 0
      %p81 = por %p79, %p80
      %p82 = scmp.ne.s32.totalorder %s74, %s76
      %p83 = scmp.eq.s32.totalorder %s24, 1
      %p84 = por %p82, %p83
      %p85 = scmp.ne.s32.totalorder %s76, %s77
      %p86 = scmp.eq.s32.totalorder %s24, 0
      %p87 = por %p85, %p86
      %p88 = scmp.ne.s32.totalorder %s76, %s77
      %p89 = scmp.eq.s32.totalorder %s25, 1
      %p90 = por %p88, %p89
      %p92 = scmp.ne.s32.totalorder %s77, %s91
      %p93 = scmp.eq.s32.totalorder %s25, 0
      %p94 = por %p92, %p93
      %s96 = sadd.s32 %s95, 1
      %p99 = scmp.eq.s32.totalorder %s19, 1
      %p100 = scmp.ne.s32.totalorder %s95, %s97
      %p101 = scmp.eq.s32.totalorder %s19, 0
      %p102 = por %p100, %p101
      %p103 = scmp.ne.s32.totalorder %s95, %s97
      %p104 = scmp.eq.s32.totalorder %s24, 1
      %p105 = por %p103, %p104
      %p106 = scmp.ne.s32.totalorder %s97, %s98
      %p107 = scmp.eq.s32.totalorder %s24, 0
      %p108 = por %p106, %p107
      %p109 = scmp.ne.s32.totalorder %s97, %s98
      %p110 = scmp.eq.s32.totalorder %s25, 1
      %p111 = por %p109, %p110
      %p113 = scmp.ne.s32.totalorder %s98, %s112
      %p114 = scmp.eq.s32.totalorder %s25, 0
      %p115 = por %p113, %p114
      %s117 = sadd.s32 %s116, 1
      %p120 = scmp.eq.s32.totalorder %s19, 1
      %p121 = scmp.ne.s32.totalorder %s116, %s118
      %p122 = scmp.eq.s32.totalorder %s19, 0
      %p123 = por %p121, %p122
      %p124 = scmp.ne.s32.totalorder %s116, %s118
      %p125 = scmp.eq.s32.totalorder %s24, 1
      %p126 = por %p124, %p125
      %p127 = scmp.ne.s32.totalorder %s118, %s119
      %p128 = scmp.eq.s32.totalorder %s24, 0
      %p129 = por %p127, %p128
      %p130 = scmp.ne.s32.totalorder %s118, %s119
      %p131 = scmp.eq.s32.totalorder %s25, 1
      %p132 = por %p130, %p131
      %p134 = scmp.ne.s32.totalorder %s119, %s133
      %p135 = scmp.eq.s32.totalorder %s25, 0
      %p136 = por %p134, %p135
      %s138 = sadd.s32 %s137, 1
      %p141 = scmp.eq.s32.totalorder %s19, 1
      %p142 = scmp.ne.s32.totalorder %s137, %s139
      %p143 = scmp.eq.s32.totalorder %s19, 0
      %p144 = por %p142, %p143
      %p145 = scmp.ne.s32.totalorder %s137, %s139
      %p146 = scmp.eq.s32.totalorder %s24, 1
      %p147 = por %p145, %p146
      %p148 = scmp.ne.s32.totalorder %s139, %s140
      %p149 = scmp.eq.s32.totalorder %s24, 0
      %p150 = por %p148, %p149
      %p151 = scmp.ne.s32.totalorder %s139, %s140
      %p152 = scmp.eq.s32.totalorder %s25, 1
      %p153 = por %p151, %p152
      %p155 = scmp.ne.s32.totalorder %s140, %s154
      %p156 = scmp.eq.s32.totalorder %s25, 0
      %p157 = por %p155, %p156
      %s159 = sadd.s32 %s158, 1
      %p162 = scmp.eq.s32.totalorder %s19, 1
      %p163 = scmp.ne.s32.totalorder %s158, %s160
      %p164 = scmp.eq.s32.totalorder %s19, 0
      %p165 = por %p163, %p164
      %p166 = scmp.ne.s32.totalorder %s158, %s160
      %p167 = scmp.eq.s32.totalorder %s24, 1
      %p168 = por %p166, %p167
      %p169 = scmp.ne.s32.totalorder %s160, %s161
      %p170 = scmp.eq.s32.totalorder %s24, 0
      %p171 = por %p169, %p170
      %p172 = scmp.ne.s32.totalorder %s160, %s161
      %p173 = scmp.eq.s32.totalorder %s25, 1
      %p174 = por %p172, %p173
      %p176 = scmp.ne.s32.totalorder %s161, %s175
      %p177 = scmp.eq.s32.totalorder %s25, 0
      %p178 = por %p176, %p177
      %s180 = sadd.s32 %s179, 1
      %p183 = scmp.eq.s32.totalorder %s19, 1
      %p184 = scmp.ne.s32.totalorder %s179, %s181
      %p185 = scmp.eq.s32.totalorder %s19, 0
      %p186 = por %p184, %p185
      %p187 = scmp.ne.s32.totalorder %s179, %s181
      %p188 = scmp.eq.s32.totalorder %s24, 1
      %p189 = por %p187, %p188
      %p190 = scmp.ne.s32.totalorder %s181, %s182
      %p191 = scmp.eq.s32.totalorder %s24, 0
      %p192 = por %p190, %p191
      %p193 = scmp.ne.s32.totalorder %s181, %s182
      %p194 = scmp.eq.s32.totalorder %s25, 1
      %p195 = por %p193, %p194
      %p197 = scmp.ne.s32.totalorder %s182, %s196
      %p198 = scmp.eq.s32.totalorder %s25, 0
      %p199 = por %p197, %p198
      %s201 = sadd.s32 %s200, 1
      %p204 = scmp.eq.s32.totalorder %s19, 1
      %p205 = scmp.ne.s32.totalorder %s200, %s202
      %p206 = scmp.eq.s32.totalorder %s19, 0
      %p207 = por %p205, %p206
      %p208 = scmp.ne.s32.totalorder %s200, %s202
      %p209 = scmp.eq.s32.totalorder %s24, 1
      %p210 = por %p208, %p209
      %p211 = scmp.ne.s32.totalorder %s202, %s203
      %p212 = scmp.eq.s32.totalorder %s24, 0
      %p213 = por %p211, %p212
      %p214 = scmp.ne.s32.totalorder %s202, %s203
      %p215 = scmp.eq.s32.totalorder %s25, 1
      %p216 = por %p214, %p215
      %p218 = scmp.ne.s32.totalorder %s203, %s217
      %p219 = scmp.eq.s32.totalorder %s25, 0
      %p220 = por %p218, %p219
      %s222 = sadd.s32 %s221, 1
      %p225 = scmp.eq.s32.totalorder %s19, 1
      %p226 = scmp.ne.s32.totalorder %s221, %s223
      %p227 = scmp.eq.s32.totalorder %s19, 0
      %p228 = por %p226, %p227
      %p229 = scmp.ne.s32.totalorder %s221, %s223
      %p230 = scmp.eq.s32.totalorder %s24, 1
      %p231 = por %p229, %p230
      %p232 = scmp.ne.s32.totalorder %s223, %s224
      %p233 = scmp.eq.s32.totalorder %s24, 0
      %p234 = por %p232, %p233
      %p235 = scmp.ne.s32.totalorder %s223, %s224
      %p236 = scmp.eq.s32.totalorder %s25, 1
      %p237 = por %p235, %p236
      %p239 = scmp.ne.s32.totalorder %s224, %s238
      %p240 = scmp.eq.s32.totalorder %s25, 0
      %p241 = por %p239, %p240
      %s242 = ssub.s32 %s19, %s26
      %p243 = scmp.eq.s32.totalorder %s242, 0
      %s245 = sadd.s32 %s244, 1
      %s246 = scalar_select %p243, %s244, %s245
      %p249 = pneg %p243
      %p250 = scmp.eq.s32.totalorder %s19, 1
      %p251 = por %p249, %p250
      %p252 = scmp.ne.s32.totalorder %s244, %s247
      %p253 = scmp.eq.s32.totalorder %s19, 0
      %p254 = por %p252, %p253
      %p255 = scmp.ne.s32.totalorder %s244, %s247
      %p256 = scmp.eq.s32.totalorder %s24, 1
      %p257 = por %p255, %p256
      %p258 = scmp.ne.s32.totalorder %s247, %s248
      %p259 = scmp.eq.s32.totalorder %s24, 0
      %p260 = por %p258, %p259
      %p261 = scmp.ne.s32.totalorder %s247, %s248
      %p262 = scmp.eq.s32.totalorder %s25, 1
      %p263 = por %p261, %p262
      %p265 = scmp.ne.s32.totalorder %s248, %s264
      %p266 = scmp.eq.s32.totalorder %s25, 0
      %p267 = por %p265, %p266
      %p268 = scmp.le.s32.totalorder 1, %s19
      %p269 = scmp.lt.s32.totalorder %s19, 3
      %p270 = pnand %p268, %p269
      %p271 = pneg %p270
      // Predicated region
      $region9: #{tpu_custom_call.1} parent=5 // pred_check
        _
      $region10: #{tpu_custom_call.1} parent=5 // pred_check_branch
        %273 = sbr.rel (%p270) target = $region12
      $region11: #{tpu_custom_call.1} parent=5 // pred_region
        %s274 = ssub.s32 %s19, 1
        // Predicated region
        $region13: #{tpu_custom_call.1} parent=11 // pred_check
          %p275 = pneg %p66
        $region14: #{tpu_custom_call.1} parent=11 // pred_check_branch
          %277 = sbr.rel (%p275) target = $region16
        $region15: #{tpu_custom_call.1} parent=11 // pred_region
          _
        $region16: #{tpu_custom_call.1} parent=11 // pred_fallthru
          _
        // Predicated region
        $region17: #{tpu_custom_call.1} parent=11 // pred_check
          %p278 = pneg %p87
        $region18: #{tpu_custom_call.1} parent=11 // pred_check_branch
          %280 = sbr.rel (%p278) target = $region20
        $region19: #{tpu_custom_call.1} parent=11 // pred_region
          _
        $region20: #{tpu_custom_call.1} parent=11 // pred_fallthru
          _
        // Predicated region
        $region21: #{tpu_custom_call.1} parent=11 // pred_check
          %p281 = pneg %p108
        $region22: #{tpu_custom_call.1} parent=11 // pred_check_branch
          %283 = sbr.rel (%p281) target = $region24
        $region23: #{tpu_custom_call.1} parent=11 // pred_region
          _
        $region24: #{tpu_custom_call.1} parent=11 // pred_fallthru
          _
        // Predicated region
        $region25: #{tpu_custom_call.1} parent=11 // pred_check
          %p284 = pneg %p129
        $region26: #{tpu_custom_call.1} parent=11 // pred_check_branch
          %286 = sbr.rel (%p284) target = $region28
        $region27: #{tpu_custom_call.1} parent=11 // pred_region
          _
        $region28: #{tpu_custom_call.1} parent=11 // pred_fallthru
          _
        // Predicated region
        $region29: #{tpu_custom_call.1} parent=11 // pred_check
          %p287 = pneg %p150
        $region30: #{tpu_custom_call.1} parent=11 // pred_check_branch
          %289 = sbr.rel (%p287) target = $region32
        $region31: #{tpu_custom_call.1} parent=11 // pred_region
          _
        $region32: #{tpu_custom_call.1} parent=11 // pred_fallthru
          _
        // Predicated region
        $region33: #{tpu_custom_call.1} parent=11 // pred_check
          %p290 = pneg %p171
        $region34: #{tpu_custom_call.1} parent=11 // pred_check_branch
          %292 = sbr.rel (%p290) target = $region36
        $region35: #{tpu_custom_call.1} parent=11 // pred_region
          _
        $region36: #{tpu_custom_call.1} parent=11 // pred_fallthru
          _
        // Predicated region
        $region37: #{tpu_custom_call.1} parent=11 // pred_check
          %p293 = pneg %p192
        $region38: #{tpu_custom_call.1} parent=11 // pred_check_branch
          %295 = sbr.rel (%p293) target = $region40
        $region39: #{tpu_custom_call.1} parent=11 // pred_region
          _
        $region40: #{tpu_custom_call.1} parent=11 // pred_fallthru
          _
        // Predicated region
        $region41: #{tpu_custom_call.1} parent=11 // pred_check
          %p296 = pneg %p213
        $region42: #{tpu_custom_call.1} parent=11 // pred_check_branch
          %298 = sbr.rel (%p296) target = $region44
        $region43: #{tpu_custom_call.1} parent=11 // pred_region
          _
        $region44: #{tpu_custom_call.1} parent=11 // pred_fallthru
          _
        // Predicated region
        $region45: #{tpu_custom_call.1} parent=11 // pred_check
          %p299 = pneg %p234
        $region46: #{tpu_custom_call.1} parent=11 // pred_check_branch
          %301 = sbr.rel (%p299) target = $region48
        $region47: #{tpu_custom_call.1} parent=11 // pred_region
          _
        $region48: #{tpu_custom_call.1} parent=11 // pred_fallthru
          _
      $region12: #{tpu_custom_call.1} parent=5 // pred_fallthru
        _
      %p302 = scmp.lt.s32.totalorder %s19, 2
      // Predicated region
      $region49: #{tpu_custom_call.1} parent=5 // pred_check
        %p303 = pneg %p302
      $region50: #{tpu_custom_call.1} parent=5 // pred_check_branch
        %305 = sbr.rel (%p303) target = $region52
      $region51: #{tpu_custom_call.1} parent=5 // pred_region
        // Predicated region
        $region53: #{tpu_custom_call.1} parent=51 // pred_check
          %p306 = pneg %p39
        $region54: #{tpu_custom_call.1} parent=51 // pred_check_branch
          %308 = sbr.rel (%p306) target = $region56
        $region55: #{tpu_custom_call.1} parent=51 // pred_region
          %p309 = scmp.lt.s32.totalorder %s19, 1
          %s310 = scalar_select %p309, %s19, 1
          %s311 = smul.addr %s310, 8
          %s312 = scalar_lea.vmem %s0, %s311
        $region56: #{tpu_custom_call.1} parent=51 // pred_fallthru
          _
      $region52: #{tpu_custom_call.1} parent=5 // pred_fallthru
        _
      %p313 = scmp.le.s32.totalorder 1, %s19
      %p314 = scmp.lt.s32.totalorder %s19, 3
      %p315 = pnand %p313, %p314
      %p316 = pneg %p315
      // Predicated region
      $region57: #{tpu_custom_call.1} parent=5 // pred_check
        _
      $region58: #{tpu_custom_call.1} parent=5 // pred_check_branch
        %318 = sbr.rel (%p315) target = $region60
      $region59: #{tpu_custom_call.1} parent=5 // pred_region
        %s319 = ssub.s32 %s19, 1
        %p320 = scmp.lt.s32.totalorder %s24, 1
        %s321 = scalar_select %p320, %s24, 1
        %s322 = smul.addr %s321, 8
        %s323 = scalar_lea.vmem %s0, %s322
        %p324 = pneg %p45
        %p325 = pneg %p42
        %p326 = pneg %p66
        %p327 = pneg %p63
        %p328 = pneg %p87
        %p329 = pneg %p84
        %p330 = pneg %p108
        %p331 = pneg %p105
        %p332 = pneg %p129
        %p333 = pneg %p126
        %p334 = pneg %p150
        %p335 = pneg %p147
        %p336 = pneg %p171
        %p337 = pneg %p168
        %p338 = pneg %p192
        %p339 = pneg %p189
        %p340 = pneg %p213
        %p341 = pneg %p210
        %p342 = pneg %p234
        %p343 = pneg %p231
        %p344 = pneg %p260
        %p345 = pneg %p257
        %s346 = sand.u32 %s247, 1
        %s347 = scalar_lea.sflag [#allocation3], %s346
        %s348 = sand.u32 %s247, 1
        %s349 = smul.addr %s348, 8
        %s350 = scalar_lea.vmem [#allocation2], %s349
        %p351 = scmp.lt.s32.totalorder %s24, 1
        %s352 = scalar_select %p351, %s24, 1
        %s353 = smul.addr %s352, 8
        %s354 = scalar_lea.vmem %s0, %s353
        %v355 = vld [vmem:[%s354] sm:$0xff]
        %357 = vrot.lane.b32.xlu0 %v355, 7
        %v358 = vpop.permute.xlu0 %357
        %vm360 = vcmask 56320
        %v361 = vsel %vm360, 0.0, %v358
        %vm362 = vcmask 580608
        %v363 = vsel %vm362, %v361, 0.0
        %365 = vrot.lane.b32.xlu0 %v363, 127
        %v366 = vpop.permute.xlu0 %365
        %368 = vrot.lane.b32.xlu0 %v363, 126
        %v369 = vpop.permute.xlu0 %368
        %371 = vrot.lane.b32.xlu0 %v363, 125
        %v372 = vpop.permute.xlu0 %371
        %374 = vrot.lane.b32.xlu0 %v363, 124
        %v375 = vpop.permute.xlu0 %374
        %377 = vrot.lane.b32.xlu0 %v363, 123
        %v378 = vpop.permute.xlu0 %377
        %380 = vrot.lane.b32.xlu0 %v363, 122
        %v381 = vpop.permute.xlu0 %380
        %383 = vrot.lane.b32.xlu0 %v363, 121
        %v384 = vpop.permute.xlu0 %383
        %386 = vrot.lane.b32.xlu0 %v363, 120
        %v387 = vpop.permute.xlu0 %386
        %389 = vrot.lane.b32.xlu0 %v363, 119
        %v390 = vpop.permute.xlu0 %389
        %392 = vrot.lane.b32.xlu0 %v363, 118
        %v393 = vpop.permute.xlu0 %392
        %395 = vrot.lane.b32.xlu0 %v363, 117
        %v396 = vpop.permute.xlu0 %395
        %398 = vrot.lane.b32.xlu0 %v363, 116
        %v399 = vpop.permute.xlu0 %398
        %401 = vrot.lane.b32.xlu0 %v363, 115
        %v402 = vpop.permute.xlu0 %401
        %404 = vrot.lane.b32.xlu0 %v363, 114
        %v405 = vpop.permute.xlu0 %404
        %v407 = vld [vmem:[%s1] sm:$0xff]
        %vm408 = vcmask 982016
        %v410 = vsel %vm408, %v407, 0
        %412 = vmatprep.subr.mxu0 0.0
        %413 = vmatpush1.msra.mxu0 %v363
        %414 = vmatprep.subr.mxu0 0.0
        %415 = vmatpush1.msra.mxu0 %v366
        %416 = vmatprep.subr.mxu0 0.0
        %417 = vmatpush1.msra.mxu0 %v369
        %418 = vmatprep.subr.mxu0 0.0
        %419 = vmatpush1.msra.mxu0 %v372
        %420 = vmatprep.subr.mxu0 0.0
        %421 = vmatpush1.msra.mxu0 %v375
        %422 = vmatprep.subr.mxu0 0.0
        %423 = vmatpush1.msra.mxu0 %v378
        %424 = vmatprep.subr.mxu0 0.0
        %425 = vmatpush1.msra.mxu0 %v381
        %426 = vmatprep.subr.mxu0 0.0
        %427 = vmatpush1.msra.mxu0 %v384
        %428 = vmatprep.subr.mxu0 0.0
        %429 = vmatpush1.msra.mxu0 %v387
        %430 = vmatprep.subr.mxu0 0.0
        %431 = vmatpush1.msra.mxu0 %v390
        %432 = vmatprep.subr.mxu0 0.0
        %433 = vmatpush1.msra.mxu0 %v393
        %434 = vmatprep.subr.mxu0 0.0
        %435 = vmatpush1.msra.mxu0 %v396
        %436 = vmatprep.subr.mxu0 0.0
        %437 = vmatpush1.msra.mxu0 %v399
        %438 = vmatprep.subr.mxu0 0.0
        %439 = vmatpush1.msra.mxu0 %v402
        %440 = vmatprep.subr.mxu0 0.0
        %441 = vmatpush1.msra.mxu0 %v405
        %442 = vmatprep.subr.mxu0 0.0
        %443 = vmatpush1.msra.mxu0 0.0
        %444 = vmatprep.subr.mxu0 0.0
        %445 = vmatpush1.msra.mxu0 0.0
        %446 = vmatprep.subr.mxu0 0.0
        %447 = vmatpush1.msra.mxu0 0.0
        %448 = vmatprep.subr.mxu0 0.0
        %449 = vmatpush1.msra.mxu0 0.0
        %450 = vmatprep.subr.mxu0 0.0
        %451 = vmatpush1.msra.mxu0 0.0
        %452 = vmatprep.subr.mxu0 0.0
        %453 = vmatpush1.msra.mxu0 0.0
        %454 = vmatprep.subr.mxu0 0.0
        %455 = vmatpush1.msra.mxu0 0.0
        %456 = vmatprep.subr.mxu0 0.0
        %457 = vmatpush1.msra.mxu0 0.0
        %458 = vmatprep.subr.mxu0 0.0
        %459 = vmatpush1.msra.mxu0 0.0
        %460 = vmatprep.subr.mxu0 0.0
        %461 = vmatpush1.msra.mxu0 0.0
        %462 = vmatprep.subr.mxu0 0.0
        %463 = vmatpush1.msra.mxu0 0.0
        %464 = vmatprep.subr.mxu0 0.0
        %465 = vmatpush1.msra.mxu0 0.0
        %466 = vmatprep.subr.mxu0 0.0
        %467 = vmatpush1.msra.mxu0 0.0
        %468 = vmatprep.subr.mxu0 0.0
        %469 = vmatpush1.msra.mxu0 0.0
        %470 = vmatprep.subr.mxu0 0.0
        %471 = vmatpush1.msra.mxu0 0.0
        %472 = vmatprep.subr.mxu0 0.0
        %473 = vmatpush1.msra.mxu0 0.0
        %474 = vmatprep.subr.mxu0 0.0
        %475 = vmatpush1.msra.mxu0 0.0
        %476 = vmatprep.mubr.f32.mxu0 0.0
        %477 = vmatmul.mubr.f32.gmra.mrb[0].mxu0 %v410
        %v478 = vpop.f32.mrb[0].mxu0
        %v479 = vadd.f32 0.0, %v478
        %v480 = vpop.f32.mrb[0].mxu0
        %481 = vdwg.mxu0
        %v482 = vld [vmem:[%s4] sm:$0xff]
        %484 = vset.pattern.permute.xlu0 0
        %485 = vperm.xlu0 %484, %v482
        %v486 = vpop.permute.xlu0 %485
        %v488 = vmul.f32 %v479, %v486
        %v489 = vld [vmem:[%s5] sm:$0xff]
        %491 = vset.pattern.permute.xlu0 0
        %492 = vperm.xlu0 %491, %v489
        %v493 = vpop.permute.xlu0 %492
        %v495 = vadd.f32 %v488, %v493
        %v496 = vmax.f32 %v495, 0.0
        %498 = vrot.lane.b32.xlu0 %v496, 15
        %v499 = vpop.permute.xlu0 %498
        %vm501 = vcmask 121856
        %v502 = vsel %vm501, 0.0, %v499
        %vm503 = vcmask 646144
        %v504 = vsel %vm503, %v502, 0.0
        %506 = vrot.lane.b32.xlu0 %v504, 127
        %v507 = vpop.permute.xlu0 %506
        %509 = vrot.lane.b32.xlu0 %v504, 126
        %v510 = vpop.permute.xlu0 %509
        %512 = vrot.lane.b32.xlu0 %v504, 125
        %v513 = vpop.permute.xlu0 %512
        %515 = vrot.lane.b32.xlu0 %v504, 124
        %v516 = vpop.permute.xlu0 %515
        %518 = vrot.lane.b32.xlu0 %v504, 123
        %v519 = vpop.permute.xlu0 %518
        %521 = vrot.lane.b32.xlu0 %v504, 122
        %v522 = vpop.permute.xlu0 %521
        %524 = vrot.lane.b32.xlu0 %v504, 121
        %v525 = vpop.permute.xlu0 %524
        %527 = vrot.lane.b32.xlu0 %v504, 120
        %v528 = vpop.permute.xlu0 %527
        %530 = vrot.lane.b32.xlu0 %v504, 119
        %v531 = vpop.permute.xlu0 %530
        %533 = vrot.lane.b32.xlu0 %v504, 118
        %v534 = vpop.permute.xlu0 %533
        %536 = vrot.lane.b32.xlu0 %v504, 117
        %v537 = vpop.permute.xlu0 %536
        %539 = vrot.lane.b32.xlu0 %v504, 116
        %v540 = vpop.permute.xlu0 %539
        %542 = vrot.lane.b32.xlu0 %v504, 115
        %v543 = vpop.permute.xlu0 %542
        %545 = vrot.lane.b32.xlu0 %v504, 114
        %v546 = vpop.permute.xlu0 %545
        %548 = vrot.lane.b32.xlu0 %v504, 113
        %v549 = vpop.permute.xlu0 %548
        %551 = vrot.lane.b32.xlu0 %v504, 112
        %v552 = vpop.permute.xlu0 %551
        %553 = vrot.lane.b32.xlu0 %v507, 112
        %v554 = vpop.permute.xlu0 %553
        %555 = vrot.lane.b32.xlu0 %v510, 112
        %v556 = vpop.permute.xlu0 %555
        %557 = vrot.lane.b32.xlu0 %v513, 112
        %v558 = vpop.permute.xlu0 %557
        %559 = vrot.lane.b32.xlu0 %v516, 112
        %v560 = vpop.permute.xlu0 %559
        %561 = vrot.lane.b32.xlu0 %v519, 112
        %v562 = vpop.permute.xlu0 %561
        %563 = vrot.lane.b32.xlu0 %v522, 112
        %v564 = vpop.permute.xlu0 %563
        %565 = vrot.lane.b32.xlu0 %v525, 112
        %v566 = vpop.permute.xlu0 %565
        %567 = vrot.lane.b32.xlu0 %v528, 112
        %v568 = vpop.permute.xlu0 %567
        %569 = vrot.lane.b32.xlu0 %v531, 112
        %v570 = vpop.permute.xlu0 %569
        %571 = vrot.lane.b32.xlu0 %v534, 112
        %v572 = vpop.permute.xlu0 %571
        %573 = vrot.lane.b32.xlu0 %v537, 112
        %v574 = vpop.permute.xlu0 %573
        %575 = vrot.lane.b32.xlu0 %v540, 112
        %v576 = vpop.permute.xlu0 %575
        %577 = vrot.lane.b32.xlu0 %v543, 112
        %v578 = vpop.permute.xlu0 %577
        %579 = vrot.lane.b32.xlu0 %v546, 112
        %v580 = vpop.permute.xlu0 %579
        %v596 = vld [vmem:[%s2] sm:$0xff]
        %v597 = vld [vmem:[%s2 + $0x8] sm:$0xff]
        %v599 = vsel %vm408, %v597, 0
        %601 = vmatprep.subr.mxu0 0.0
        %602 = vmatpush1.msra.mxu0 %v504
        %603 = vmatprep.subr.mxu0 0.0
        %604 = vmatpush1.msra.mxu0 %v507
        %605 = vmatprep.subr.mxu0 0.0
        %606 = vmatpush1.msra.mxu0 %v510
        %607 = vmatprep.subr.mxu0 0.0
        %608 = vmatpush1.msra.mxu0 %v513
        %609 = vmatprep.subr.mxu0 0.0
        %610 = vmatpush1.msra.mxu0 %v516
        %611 = vmatprep.subr.mxu0 0.0
        %612 = vmatpush1.msra.mxu0 %v519
        %613 = vmatprep.subr.mxu0 0.0
        %614 = vmatpush1.msra.mxu0 %v522
        %615 = vmatprep.subr.mxu0 0.0
        %616 = vmatpush1.msra.mxu0 %v525
        %617 = vmatprep.subr.mxu0 0.0
        %618 = vmatpush1.msra.mxu0 %v528
        %619 = vmatprep.subr.mxu0 0.0
        %620 = vmatpush1.msra.mxu0 %v531
        %621 = vmatprep.subr.mxu0 0.0
        %622 = vmatpush1.msra.mxu0 %v534
        %623 = vmatprep.subr.mxu0 0.0
        %624 = vmatpush1.msra.mxu0 %v537
        %625 = vmatprep.subr.mxu0 0.0
        %626 = vmatpush1.msra.mxu0 %v540
        %627 = vmatprep.subr.mxu0 0.0
        %628 = vmatpush1.msra.mxu0 %v543
        %629 = vmatprep.subr.mxu0 0.0
        %630 = vmatpush1.msra.mxu0 %v546
        %631 = vmatprep.subr.mxu0 0.0
        %632 = vmatpush1.msra.mxu0 %v549
        %633 = vmatprep.subr.mxu0 0.0
        %634 = vmatpush1.msra.mxu0 %v552
        %635 = vmatprep.subr.mxu0 0.0
        %636 = vmatpush1.msra.mxu0 %v554
        %637 = vmatprep.subr.mxu0 0.0
        %638 = vmatpush1.msra.mxu0 %v556
        %639 = vmatprep.subr.mxu0 0.0
        %640 = vmatpush1.msra.mxu0 %v558
        %641 = vmatprep.subr.mxu0 0.0
        %642 = vmatpush1.msra.mxu0 %v560
        %643 = vmatprep.subr.mxu0 0.0
        %644 = vmatpush1.msra.mxu0 %v562
        %645 = vmatprep.subr.mxu0 0.0
        %646 = vmatpush1.msra.mxu0 %v564
        %647 = vmatprep.subr.mxu0 0.0
        %648 = vmatpush1.msra.mxu0 %v566
        %649 = vmatprep.subr.mxu0 0.0
        %650 = vmatpush1.msra.mxu0 %v568
        %651 = vmatprep.subr.mxu0 0.0
        %652 = vmatpush1.msra.mxu0 %v570
        %653 = vmatprep.subr.mxu0 0.0
        %654 = vmatpush1.msra.mxu0 %v572
        %655 = vmatprep.subr.mxu0 0.0
        %656 = vmatpush1.msra.mxu0 %v574
        %657 = vmatprep.subr.mxu0 0.0
        %658 = vmatpush1.msra.mxu0 %v576
        %659 = vmatprep.subr.mxu0 0.0
        %660 = vmatpush1.msra.mxu0 %v578
        %661 = vmatprep.subr.mxu0 0.0
        %662 = vmatpush1.msra.mxu0 %v580
        %663 = vmatprep.subr.mxu0 0.0
        %664 = vmatpush1.msra.mxu0 0.0
        %665 = vmatprep.mubr.f32.mxu0 %v599
        %666 = vmatmul.mubr.f32.gmra.mrb[0].mxu0 %v596
        %v667 = vpop.f32.mrb[0].mxu0
        %v668 = vadd.f32 0.0, %v667
        %v669 = vpop.f32.mrb[0].mxu0
        %670 = vdwg.mxu0
        %v671 = vld [vmem:[%s6] sm:$0xff]
        %673 = vset.pattern.permute.xlu0 0
        %674 = vperm.xlu0 %673, %v671
        %v675 = vpop.permute.xlu0 %674
        %v677 = vmul.f32 %v668, %v675
        %v678 = vld [vmem:[%s7] sm:$0xff]
        %680 = vset.pattern.permute.xlu0 0
        %681 = vperm.xlu0 %680, %v678
        %v682 = vpop.permute.xlu0 %681
        %v684 = vadd.f32 %v677, %v682
        %v685 = vmax.f32 %v684, 0.0
        %687 = vrot.lane.b32.xlu0 %v685, 7
        %v688 = vpop.permute.xlu0 %687
        %v690 = vsel %vm360, 0.0, %v688
        %v691 = vsel %vm362, %v690, 0.0
        %693 = vrot.lane.b32.xlu0 %v691, 127
        %v694 = vpop.permute.xlu0 %693
        %696 = vrot.lane.b32.xlu0 %v691, 126
        %v697 = vpop.permute.xlu0 %696
        %699 = vrot.lane.b32.xlu0 %v691, 125
        %v700 = vpop.permute.xlu0 %699
        %702 = vrot.lane.b32.xlu0 %v691, 124
        %v703 = vpop.permute.xlu0 %702
        %705 = vrot.lane.b32.xlu0 %v691, 123
        %v706 = vpop.permute.xlu0 %705
        %708 = vrot.lane.b32.xlu0 %v691, 122
        %v709 = vpop.permute.xlu0 %708
        %711 = vrot.lane.b32.xlu0 %v691, 121
        %v712 = vpop.permute.xlu0 %711
        %714 = vrot.lane.b32.xlu0 %v691, 120
        %v715 = vpop.permute.xlu0 %714
        %717 = vrot.lane.b32.xlu0 %v691, 119
        %v718 = vpop.permute.xlu0 %717
        %720 = vrot.lane.b32.xlu0 %v691, 118
        %v721 = vpop.permute.xlu0 %720
        %723 = vrot.lane.b32.xlu0 %v691, 117
        %v724 = vpop.permute.xlu0 %723
        %726 = vrot.lane.b32.xlu0 %v691, 116
        %v727 = vpop.permute.xlu0 %726
        %729 = vrot.lane.b32.xlu0 %v691, 115
        %v730 = vpop.permute.xlu0 %729
        %732 = vrot.lane.b32.xlu0 %v691, 114
        %v733 = vpop.permute.xlu0 %732
        %v735 = vld [vmem:[%s3] sm:$0xff]
        %v737 = vsel %vm408, %v735, 0
        %739 = vmatprep.subr.mxu0 0.0
        %740 = vmatpush1.msra.mxu0 %v691
        %741 = vmatprep.subr.mxu0 0.0
        %742 = vmatpush1.msra.mxu0 %v694
        %743 = vmatprep.subr.mxu0 0.0
        %744 = vmatpush1.msra.mxu0 %v697
        %745 = vmatprep.subr.mxu0 0.0
        %746 = vmatpush1.msra.mxu0 %v700
        %747 = vmatprep.subr.mxu0 0.0
        %748 = vmatpush1.msra.mxu0 %v703
        %749 = vmatprep.subr.mxu0 0.0
        %750 = vmatpush1.msra.mxu0 %v706
        %751 = vmatprep.subr.mxu0 0.0
        %752 = vmatpush1.msra.mxu0 %v709
        %753 = vmatprep.subr.mxu0 0.0
        %754 = vmatpush1.msra.mxu0 %v712
        %755 = vmatprep.subr.mxu0 0.0
        %756 = vmatpush1.msra.mxu0 %v715
        %757 = vmatprep.subr.mxu0 0.0
        %758 = vmatpush1.msra.mxu0 %v718
        %759 = vmatprep.subr.mxu0 0.0
        %760 = vmatpush1.msra.mxu0 %v721
        %761 = vmatprep.subr.mxu0 0.0
        %762 = vmatpush1.msra.mxu0 %v724
        %763 = vmatprep.subr.mxu0 0.0
        %764 = vmatpush1.msra.mxu0 %v727
        %765 = vmatprep.subr.mxu0 0.0
        %766 = vmatpush1.msra.mxu0 %v730
        %767 = vmatprep.subr.mxu0 0.0
        %768 = vmatpush1.msra.mxu0 %v733
        %769 = vmatprep.subr.mxu0 0.0
        %770 = vmatpush1.msra.mxu0 0.0
        %771 = vmatprep.subr.mxu0 0.0
        %772 = vmatpush1.msra.mxu0 0.0
        %773 = vmatprep.subr.mxu0 0.0
        %774 = vmatpush1.msra.mxu0 0.0
        %775 = vmatprep.subr.mxu0 0.0
        %776 = vmatpush1.msra.mxu0 0.0
        %777 = vmatprep.subr.mxu0 0.0
        %778 = vmatpush1.msra.mxu0 0.0
        %779 = vmatprep.subr.mxu0 0.0
        %780 = vmatpush1.msra.mxu0 0.0
        %781 = vmatprep.subr.mxu0 0.0
        %782 = vmatpush1.msra.mxu0 0.0
        %783 = vmatprep.subr.mxu0 0.0
        %784 = vmatpush1.msra.mxu0 0.0
        %785 = vmatprep.subr.mxu0 0.0
        %786 = vmatpush1.msra.mxu0 0.0
        %787 = vmatprep.subr.mxu0 0.0
        %788 = vmatpush1.msra.mxu0 0.0
        %789 = vmatprep.subr.mxu0 0.0
        %790 = vmatpush1.msra.mxu0 0.0
        %791 = vmatprep.subr.mxu0 0.0
        %792 = vmatpush1.msra.mxu0 0.0
        %793 = vmatprep.subr.mxu0 0.0
        %794 = vmatpush1.msra.mxu0 0.0
        %795 = vmatprep.subr.mxu0 0.0
        %796 = vmatpush1.msra.mxu0 0.0
        %797 = vmatprep.subr.mxu0 0.0
        %798 = vmatpush1.msra.mxu0 0.0
        %799 = vmatprep.subr.mxu0 0.0
        %800 = vmatpush1.msra.mxu0 0.0
        %801 = vmatprep.subr.mxu0 0.0
        %802 = vmatpush1.msra.mxu0 0.0
        %803 = vmatprep.mubr.f32.mxu0 0.0
        %804 = vmatmul.mubr.f32.gmra.mrb[0].mxu0 %v737
        %v805 = vpop.f32.mrb[0].mxu0
        %v806 = vadd.f32 0.0, %v805
        %v807 = vpop.f32.mrb[0].mxu0
        %808 = vdwg.mxu0
        %v809 = vld [vmem:[%s8] sm:$0xff]
        %811 = vset.pattern.permute.xlu0 0
        %812 = vperm.xlu0 %811, %v809
        %v813 = vpop.permute.xlu0 %812
        %v815 = vmul.f32 %v806, %v813
        %v816 = vld [vmem:[%s9] sm:$0xff]
        %818 = vset.pattern.permute.xlu0 0
        %819 = vperm.xlu0 %818, %v816
        %v820 = vpop.permute.xlu0 %819
        %v822 = vadd.f32 %v815, %v820
        %v823 = vadd.f32 %v822, %v355
        %v824 = vmax.f32 %v823, 0.0
        %vm825 = vcmask 523264
        %826 = vst.msk [vmem:[%s350] sm:$0xff] %vm825, %v824
        %s827 = sand.u32 %s247, 1
        %s828 = scalar_lea.sflag [#allocation3], %s827
        %s829 = sand.u32 %s247, 1
        %s830 = smul.addr %s829, 8
        %s831 = scalar_lea.vmem [#allocation2], %s830
        // Predicated region
        $region61: #{tpu_custom_call.1} parent=59 // pred_check
          %p832 = pneg %p257
        $region62: #{tpu_custom_call.1} parent=59 // pred_check_branch
          %834 = sbr.rel (%p832) target = $region64
        $region63: #{tpu_custom_call.1} parent=59 // pred_region
          %s836 = ssub.s32 128, 128
          %837 = vsyncadd %s828, %s836
          %s838 = smul.addr %s24, 128
          %s839 = scalar_lea.hbm %s10, %s838
          %s841 = sshll.u32 %s831, 4
          %s842 = int_to_ptr.vmem [resolvable:$true] %s841
          %844 = dma.vmem_to_hbm [thread:$0]  %s842, 128, %s839, %s828
        $region64: #{tpu_custom_call.1} parent=59 // pred_fallthru
          _
      $region60: #{tpu_custom_call.1} parent=5 // pred_fallthru
        _
      %p845 = scmp.le.s32.totalorder 2, %s19
      // Predicated region
      $region65: #{tpu_custom_call.1} parent=5 // pred_check
        %p846 = pneg %p845
      $region66: #{tpu_custom_call.1} parent=5 // pred_check_branch
        %848 = sbr.rel (%p846) target = $region68
      $region67: #{tpu_custom_call.1} parent=5 // pred_region
        %s849 = ssub.s32 %s19, 2
        // Predicated region
        $region69: #{tpu_custom_call.1} parent=67 // pred_check
          %p850 = pneg %p263
        $region70: #{tpu_custom_call.1} parent=67 // pred_check_branch
          %852 = sbr.rel (%p850) target = $region72
        $region71: #{tpu_custom_call.1} parent=67 // pred_region
          %s853 = sand.u32 %s248, 1
          %s854 = scalar_lea.sflag [#allocation3], %s853
          %s855 = sand.u32 %s248, 1
          %s856 = smul.addr %s855, 8
          %s857 = scalar_lea.vmem [#allocation2], %s856
          %858 = dma.done %s854, 128
        $region72: #{tpu_custom_call.1} parent=67 // pred_fallthru
          _
      $region68: #{tpu_custom_call.1} parent=5 // pred_fallthru
        _
    $region6: #{tpu_custom_call.1} parent=1 // loop_footer
      %s23 = sadd.s32 1, %s19
    $region7: #{tpu_custom_call.1} parent=1 // loop_footer_branch
      %18 = sbr.rel target = $region3
    $region8: #{tpu_custom_call.1} parent=1 // loop_exit
      _
    %859 = vsyncpa [#allocation3], 1
    %s860 = scalar_lea.sflag [#allocation3], 1
    %861 = vsyncpa %s860, 1

</llo_original>
